<compile_context>
chip_gen: v5e
topology: v5e:2x2
jax: 0.10.0
libtpu: 0.0.40
codegen_flags: <defaults>
</compile_context>

<pallas_src>
import functools

import jax
import jax.numpy as jnp
from jax.experimental import pallas as pl
from jax.experimental.pallas import tpu as pltpu


def _round_up(x: int, m: int) -> int:
    return ((x + m - 1) // m) * m


def _proto_dist_kernel(q_ref, ct_ref, cn_ref, o_ref, pred_ref, *,
                       inv_temp, num_way):
    """One query tile: -||q - c||^2 / temperature + fused argmin prediction.

    q_ref    : (TQ, F)     query tile (float)
    ct_ref   : (F, W_pad)  centroids, transposed, zero-padded to 128 lanes, bf16
    cn_ref   : (1, W_pad)  ||c||^2 per padded way, f32
    o_ref    : (TQ, W_pad) output: -D / temperature (f32)
    pred_ref : (TQ, 1)     argmin_D over the real W ways (int32)
    """
    qf = q_ref[...].astype(jnp.float32)
    q_norm = jnp.sum(qf * qf, axis=-1, keepdims=True)            # (TQ, 1)   VPU/XLU
    cross = jnp.dot(q_ref[...].astype(jnp.bfloat16), ct_ref[...],
                    preferred_element_type=jnp.float32)          # (TQ, Wp)  MXU
    neg_d = (2.0 * cross - q_norm - cn_ref[...]) * inv_temp      # == -D / T
    o_ref[...] = neg_d.astype(o_ref.dtype)

    # Fused prediction: argmin(D) == first lane attaining max(-D) among the
    # real ways.  Padded lanes (>= num_way) are masked out.  Implemented as
    # max-reduce / compare / min-reduce (no argmax primitive required).
    lane = jax.lax.broadcasted_iota(jnp.int32, neg_d.shape, 1)   # (TQ, W_pad)
    valid = lane < num_way
    masked = jnp.where(valid, neg_d, -jnp.inf)
    row_max = jnp.max(masked, axis=-1, keepdims=True)            # (TQ, 1)
    hit = (masked == row_max) & valid
    cand = jnp.where(hit, lane.astype(jnp.float32), float(num_way))
    pred_ref[...] = jnp.min(cand, axis=-1, keepdims=True).astype(jnp.int32)


def proto_neg_distances(x_query, centroids, temperature, *,
                        tq_max=512, vmem_budget_bytes=12 * 1024 * 1024):
    """Returns (-||q - c||^2 / temperature) as (Q, W) and argmin class as (Q,)."""
    Q, F = x_query.shape
    W, Fc = centroids.shape
    assert F == Fc
    if Q == 0:   # degenerate episode: no queries
        return jnp.zeros((0, W), jnp.float32), jnp.zeros((0,), jnp.int32)

    # Lane-dense output: pad ways to 128 lanes (unmasked vst), slice back later.
    W_pad = _round_up(W, 128)

    # Query tile: >= 2 roughly balanced grid steps (v7x megacore), <= tq_max,
    # and small enough that the (double-buffered) working set fits the VMEM
    # budget on every TPU generation without a vmem_limit_bytes override.
    tq = min(tq_max, _round_up(pl.cdiv(Q, 2), 8))
    resident_bytes = 2 * (F * W_pad * 2 + W_pad * 4)             # centroids + norms (worst case 2x)
    per_row_bytes = 2 * (F * 4 + W_pad * 4 + 4)                  # q tile + both output tiles
    rows_fit = max(8, (vmem_budget_bytes - resident_bytes) // per_row_bytes)
    tq = max(8, min(tq, int(rows_fit) // 8 * 8))
    num_tiles = pl.cdiv(Q, tq)

    # Hoisted (tiny) centroid prep: transpose + zero-pad ways; f32 norms.
    c_pad = jnp.pad(centroids.astype(jnp.float32), ((0, W_pad - W), (0, 0)))
    ct_bf16 = c_pad.T.astype(jnp.bfloat16)                        # (F, W_pad)
    c_norm = jnp.sum(c_pad * c_pad, axis=-1).reshape(1, W_pad)    # (1, W_pad)

    kernel = functools.partial(_proto_dist_kernel,
                               inv_temp=1.0 / float(temperature),
                               num_way=W)

    def build(single_buffer_resident):
        extra = ({"pipeline_mode": pl.Buffered(1)}
                 if single_buffer_resident else {})
        return pl.pallas_call(
            kernel,
            out_shape=(jax.ShapeDtypeStruct((Q, W_pad), jnp.float32),
                       jax.ShapeDtypeStruct((Q, 1), jnp.int32)),
            grid=(num_tiles,),
            in_specs=[
                pl.BlockSpec((tq, F), lambda i: (i, 0)),               # pipelined queries
                pl.BlockSpec((F, W_pad), lambda i: (0, 0), **extra),   # resident centroids
                pl.BlockSpec((1, W_pad), lambda i: (0, 0), **extra),   # resident ||c||^2
            ],
            out_specs=(
                pl.BlockSpec((tq, W_pad), lambda i: (i, 0)),
                pl.BlockSpec((tq, 1), lambda i: (i, 0)),
            ),
            compiler_params=pltpu.CompilerParams(
                dimension_semantics=("parallel",)),
        )

    try:
        neg_d_pad, pred = build(True)(x_query, ct_bf16, c_norm)
    except Exception:
        # pl.Buffered(1) not supported on this jax/TPU: fall back to default
        # double buffering of the (small) resident centroid blocks.
        neg_d_pad, pred = build(False)(x_query, ct_bf16, c_norm)

    return neg_d_pad[:, :W], pred[:, 0]


def proto_loss_forward(X, labels, *, num_way, num_shot, temperature):
    """JAX/Pallas equivalent of ProtoLoss.forward (mode resolved to num_way).

    X      : (N, F) float, first num_way*num_shot rows are the support set
             ordered so that row = shot * num_way + way (torch convention).
    labels : (Q,) int32 ground-truth class index per query sample.
    Returns (-D, accuracy) exactly like the torch module.
    """
    num_labeled = num_way * num_shot
    F = X.shape[-1]
    X_support = X[:num_labeled]
    X_query = X[num_labeled:]
    # torch: reshape(num_shot, num_way, -1).transpose(0, 1).mean(dim=1)
    #     == mean over the shot axis of the (num_shot, num_way, F) view.
    centroids = X_support.reshape(num_shot, num_way, F).mean(axis=0)   # (W, F)

    neg_D, pred = proto_neg_distances(X_query, centroids, temperature)  # (Q, W), (Q,)

    # get_accuracy: y_hat = argmin(D, -1); mean of matches (pred fused in-kernel).
    acc = jnp.mean((labels.astype(pred.dtype) == pred).astype(jnp.float32))
    return neg_D, acc


if __name__ == "__main__":
    # Small deterministic example: 4-way, 2-shot, 3 queries per way, F=32.
    num_way, num_shot, num_query = 4, 2, 3
    feat_dim = 32
    temperature = 64.0

    num_labeled = num_way * num_shot
    num_q_total = num_way * num_query
    N = num_labeled + num_q_total

    key = jax.random.PRNGKey(0)
    k_proto, k_noise, _ = jax.random.split(key, 3)

    # Build class prototypes + noise so the episode has structure.
    protos = jax.random.normal(k_proto, (num_way, feat_dim), dtype=jnp.float32)
    noise = 0.1 * jax.random.normal(k_noise, (N, feat_dim), dtype=jnp.float32)

    # Support rows ordered as shot-major / way-fastest: row = shot*num_way + way.
    support_cls = jnp.tile(jnp.arange(num_way), num_shot)          # (num_labeled,)
    # Query rows: way-major blocks of num_query each.
    query_cls = jnp.repeat(jnp.arange(num_way), num_query)         # (num_q_total,)
    all_cls = jnp.concatenate([support_cls, query_cls])
    X = protos[all_cls] + noise                                     # (N, F) float32
    labels = query_cls.astype(jnp.int32)                            # query labels

    neg_D, acc = proto_loss_forward(
        X, labels, num_way=num_way, num_shot=num_shot, temperature=temperature
    )
    neg_D = jax.block_until_ready(neg_D)
    acc = jax.block_until_ready(acc)

    assert neg_D.shape == (num_q_total, num_way)
    assert neg_D.dtype == jnp.float32

    # Pure-JAX reference (exact broadcast-diff form, f32) with a tolerance that
    # allows for the bf16 MXU cross term.
    Xq = X[num_labeled:]
    cent = X[:num_labeled].reshape(num_shot, num_way, feat_dim).mean(axis=0)
    D_ref = jnp.sum((Xq[:, None, :] - cent[None, :, :]) ** 2, axis=-1) / temperature
    assert jnp.allclose(neg_D, -D_ref, rtol=5e-2, atol=5e-2), "distance mismatch"
    y_hat_ref = jnp.argmin(D_ref, axis=-1)
    acc_ref = jnp.mean((labels == y_hat_ref).astype(jnp.float32))
    assert jnp.allclose(acc, acc_ref), "accuracy mismatch"

    print("KERNEL_OK")
</pallas_src>

<mosaic_0001>
module attributes {stable_mosaic.version = 11 : i64} {
  func.func @_proto_dist_kernel(%arg0: i32, %arg1: memref<8x32xf32, #tpu.memory_space<vmem>>, %arg2: memref<32x128xbf16, #tpu.memory_space<vmem>>, %arg3: memref<1x128xf32, #tpu.memory_space<vmem>>, %arg4: memref<8x128xf32, #tpu.memory_space<vmem>>, %arg5: memref<8x1xi32, #tpu.memory_space<vmem>>) attributes {dimension_semantics = [#tpu.dimension_semantics<parallel>], iteration_bounds = array<i64: 2>, scalar_prefetch = 0 : i64, scratch_operands = 0 : i64, tpu.core_type = #tpu.core_type<tc>, window_params = [{transform_indices = @transform_0, window_bounds = array<i64: 8, 32>}, {pipeline_mode = #tpu.pipeline_mode<synchronous>, transform_indices = @transform_1, window_bounds = array<i64: 32, 128>}, {pipeline_mode = #tpu.pipeline_mode<synchronous>, transform_indices = @transform_2, window_bounds = array<i64: 1, 128>}, {transform_indices = @transform_3, window_bounds = array<i64: 8, 128>}, {transform_indices = @transform_4, window_bounds = array<i64: 8, 1>}]} {
    %c0 = arith.constant 0 : index
    %c0_0 = arith.constant 0 : index
    %0 = vector.load %arg1[%c0, %c0_0] : memref<8x32xf32, #tpu.memory_space<vmem>>, vector<8x32xf32>
    %1 = arith.mulf %0, %0 : vector<8x32xf32>
    %cst = arith.constant dense<0.000000e+00> : vector<8xf32>
    %2 = vector.multi_reduction <add>, %1, %cst [1] : vector<8x32xf32> to vector<8xf32>
    %3 = vector.shape_cast %2 : vector<8xf32> to vector<8x1xf32>
    %c0_1 = arith.constant 0 : index
    %c0_2 = arith.constant 0 : index
    %4 = vector.load %arg1[%c0_1, %c0_2] : memref<8x32xf32, #tpu.memory_space<vmem>>, vector<8x32xf32>
    %5 = arith.truncf %4 : vector<8x32xf32> to vector<8x32xbf16>
    %c0_3 = arith.constant 0 : index
    %c0_4 = arith.constant 0 : index
    %6 = vector.load %arg2[%c0_3, %c0_4] : memref<32x128xbf16, #tpu.memory_space<vmem>>, vector<32x128xbf16>
    %cst_5 = arith.constant dense<0.000000e+00> : vector<8x128xf32>
    %7 = tpu.matmul %5, %6, %cst_5 {dimension_numbers = #tpu.dot_dimension_numbers<[1], [0], [0], [1], [0, 0, 1, 1], [], []>} : vector<8x32xbf16>, vector<32x128xbf16>, vector<8x128xf32> -> vector<8x128xf32>
    %cst_6 = arith.constant 2.000000e+00 : f32
    %8 = vector.broadcast %cst_6 : f32 to vector<8x128xf32>
    %9 = arith.mulf %8, %7 : vector<8x128xf32>
    %10 = vector.broadcast %3 : vector<8x1xf32> to vector<8x128xf32>
    %11 = arith.subf %9, %10 : vector<8x128xf32>
    %c0_7 = arith.constant 0 : index
    %c0_8 = arith.constant 0 : index
    %12 = vector.load %arg3[%c0_7, %c0_8] : memref<1x128xf32, #tpu.memory_space<vmem>>, vector<1x128xf32>
    %13 = vector.broadcast %12 : vector<1x128xf32> to vector<8x128xf32>
    %14 = arith.subf %11, %13 : vector<8x128xf32>
    %cst_9 = arith.constant 1.562500e-02 : f32
    %15 = vector.broadcast %cst_9 : f32 to vector<8x128xf32>
    %16 = arith.mulf %14, %15 : vector<8x128xf32>
    %c0_10 = arith.constant 0 : index
    %c0_11 = arith.constant 0 : index
    %17 = vector.load %arg4[%c0_10, %c0_11] : memref<8x128xf32, #tpu.memory_space<vmem>>, vector<8x128xf32>
    tpu.vector_store %arg4[%c0_10, %c0_11], %16 {strides = array<i32>} : memref<8x128xf32, #tpu.memory_space<vmem>>, vector<8x128xf32>,
    %18 = tpu.iota {dimensions = array<i32: 1>} : vector<8x128xi32>
    %c4_i32 = arith.constant 4 : i32
    %19 = vector.broadcast %c4_i32 : i32 to vector<8x128xi32>
    %20 = arith.cmpi slt, %18, %19 : vector<8x128xi32>
    %cst_12 = arith.constant 0xFF800000 : f32
    %21 = vector.broadcast %cst_12 : f32 to vector<8x128xf32>
    %22 = arith.select %20, %16, %21 : vector<8x128xi1>, vector<8x128xf32>
    %cst_13 = arith.constant dense<0xFF800000> : vector<8xf32>
    %23 = vector.multi_reduction <maximumf>, %22, %cst_13 [1] : vector<8x128xf32> to vector<8xf32>
    %24 = vector.shape_cast %23 : vector<8xf32> to vector<8x1xf32>
    %25 = vector.broadcast %24 : vector<8x1xf32> to vector<8x128xf32>
    %26 = arith.cmpf oeq, %22, %25 : vector<8x128xf32>
    %27 = arith.andi %26, %20 : vector<8x128xi1>
    %28 = arith.sitofp %18 : vector<8x128xi32> to vector<8x128xf32>
    %cst_14 = arith.constant 4.000000e+00 : f32
    %29 = vector.broadcast %cst_14 : f32 to vector<8x128xf32>
    %30 = arith.select %27, %28, %29 : vector<8x128xi1>, vector<8x128xf32>
    %cst_15 = arith.constant dense<0x7F800000> : vector<8xf32>
    %31 = vector.multi_reduction <minimumf>, %30, %cst_15 [1] : vector<8x128xf32> to vector<8xf32>
    %32 = vector.shape_cast %31 : vector<8xf32> to vector<8x1xf32>
    %33 = arith.fptosi %32 : vector<8x1xf32> to vector<8x1xi32>
    %c0_16 = arith.constant 0 : index
    %c0_17 = arith.constant 0 : index
    %34 = vector.load %arg5[%c0_16, %c0_17] : memref<8x1xi32, #tpu.memory_space<vmem>>, vector<8x1xi32>
    tpu.vector_store %arg5[%c0_16, %c0_17], %33 {strides = array<i32>} : memref<8x1xi32, #tpu.memory_space<vmem>>, vector<8x1xi32>,
    return
  }
  func.func @transform_0(%arg0: i32) -> (i32, i32) {
    %c0_i32 = arith.constant 0 : i32
    %c0_i32_0 = arith.constant 0 : i32
    return %arg0, %c0_i32 : i32, i32
  }
  func.func @transform_1(%arg0: i32) -> (i32, i32) {
    %c0_i32 = arith.constant 0 : i32
    %c0_i32_0 = arith.constant 0 : i32
    %c0_i32_1 = arith.constant 0 : i32
    return %c0_i32, %c0_i32_0 : i32, i32
  }
  func.func @transform_2(%arg0: i32) -> (i32, i32) {
    %c0_i32 = arith.constant 0 : i32
    %c0_i32_0 = arith.constant 0 : i32
    %c0_i32_1 = arith.constant 0 : i32
    return %c0_i32, %c0_i32_0 : i32, i32
  }
  func.func @transform_3(%arg0: i32) -> (i32, i32) {
    %c0_i32 = arith.constant 0 : i32
    %c0_i32_0 = arith.constant 0 : i32
    return %arg0, %c0_i32 : i32, i32
  }
  func.func @transform_4(%arg0: i32) -> (i32, i32) {
    %c0_i32 = arith.constant 0 : i32
    %c0_i32_0 = arith.constant 0 : i32
    return %arg0, %c0_i32 : i32, i32
  }
}

module attributes {stable_mosaic.version = 11 : i64} {
  func.func @_proto_dist_kernel(%arg0: i32, %arg1: memref<8x32xf32, #tpu.memory_space<vmem>>, %arg2: memref<32x128xbf16, #tpu.memory_space<vmem>>, %arg3: memref<1x128xf32, #tpu.memory_space<vmem>>, %arg4: memref<8x128xf32, #tpu.memory_space<vmem>>, %arg5: memref<8x1xi32, #tpu.memory_space<vmem>>) attributes {dimension_semantics = [#tpu.dimension_semantics<parallel>], iteration_bounds = array<i64: 2>, scalar_prefetch = 0 : i64, scratch_operands = 0 : i64, tpu.core_type = #tpu.core_type<tc>, window_params = [{transform_indices = @transform_0, window_bounds = array<i64: 8, 32>}, {pipeline_mode = #tpu.pipeline_mode<synchronous>, transform_indices = @transform_1, window_bounds = array<i64: 32, 128>}, {pipeline_mode = #tpu.pipeline_mode<synchronous>, transform_indices = @transform_2, window_bounds = array<i64: 1, 128>}, {transform_indices = @transform_3, window_bounds = array<i64: 8, 128>}, {transform_indices = @transform_4, window_bounds = array<i64: 8, 1>}]} {
    %c0 = arith.constant 0 : index
    %c0_0 = arith.constant 0 : index
    %0 = vector.load %arg1[%c0, %c0_0] : memref<8x32xf32, #tpu.memory_space<vmem>>, vector<8x32xf32>
    %1 = arith.mulf %0, %0 : vector<8x32xf32>
    %cst = arith.constant dense<0.000000e+00> : vector<8xf32>
    %2 = vector.multi_reduction <add>, %1, %cst [1] : vector<8x32xf32> to vector<8xf32>
    %3 = vector.shape_cast %2 : vector<8xf32> to vector<8x1xf32>
    %c0_1 = arith.constant 0 : index
    %c0_2 = arith.constant 0 : index
    %4 = vector.load %arg1[%c0_1, %c0_2] : memref<8x32xf32, #tpu.memory_space<vmem>>, vector<8x32xf32>
    %5 = arith.truncf %4 : vector<8x32xf32> to vector<8x32xbf16>
    %c0_3 = arith.constant 0 : index
    %c0_4 = arith.constant 0 : index
    %6 = vector.load %arg2[%c0_3, %c0_4] : memref<32x128xbf16, #tpu.memory_space<vmem>>, vector<32x128xbf16>
    %cst_5 = arith.constant dense<0.000000e+00> : vector<8x128xf32>
    %7 = tpu.matmul %5, %6, %cst_5 {dimension_numbers = #tpu.dot_dimension_numbers<[1], [0], [0], [1], [0, 0, 1, 1], [], []>} : vector<8x32xbf16>, vector<32x128xbf16>, vector<8x128xf32> -> vector<8x128xf32>
    %cst_6 = arith.constant 2.000000e+00 : f32
    %8 = vector.broadcast %cst_6 : f32 to vector<8x128xf32>
    %9 = arith.mulf %8, %7 : vector<8x128xf32>
    %10 = vector.broadcast %3 : vector<8x1xf32> to vector<8x128xf32>
    %11 = arith.subf %9, %10 : vector<8x128xf32>
    %c0_7 = arith.constant 0 : index
    %c0_8 = arith.constant 0 : index
    %12 = vector.load %arg3[%c0_7, %c0_8] : memref<1x128xf32, #tpu.memory_space<vmem>>, vector<1x128xf32>
    %13 = vector.broadcast %12 : vector<1x128xf32> to vector<8x128xf32>
    %14 = arith.subf %11, %13 : vector<8x128xf32>
    %cst_9 = arith.constant 1.562500e-02 : f32
    %15 = vector.broadcast %cst_9 : f32 to vector<8x128xf32>
    %16 = arith.mulf %14, %15 : vector<8x128xf32>
    %c0_10 = arith.constant 0 : index
    %c0_11 = arith.constant 0 : index
    %17 = vector.load %arg4[%c0_10, %c0_11] : memref<8x128xf32, #tpu.memory_space<vmem>>, vector<8x128xf32>
    tpu.vector_store %arg4[%c0_10, %c0_11], %16 {strides = array<i32>} : memref<8x128xf32, #tpu.memory_space<vmem>>, vector<8x128xf32>,
    %18 = tpu.iota {dimensions = array<i32: 1>} : vector<8x128xi32>
    %c4_i32 = arith.constant 4 : i32
    %19 = vector.broadcast %c4_i32 : i32 to vector<8x128xi32>
    %20 = arith.cmpi slt, %18, %19 : vector<8x128xi32>
    %cst_12 = arith.constant 0xFF800000 : f32
    %21 = vector.broadcast %cst_12 : f32 to vector<8x128xf32>
    %22 = arith.select %20, %16, %21 : vector<8x128xi1>, vector<8x128xf32>
    %cst_13 = arith.constant dense<0xFF800000> : vector<8xf32>
    %23 = vector.multi_reduction <maximumf>, %22, %cst_13 [1] : vector<8x128xf32> to vector<8xf32>
    %24 = vector.shape_cast %23 : vector<8xf32> to vector<8x1xf32>
    %25 = vector.broadcast %24 : vector<8x1xf32> to vector<8x128xf32>
    %26 = arith.cmpf oeq, %22, %25 : vector<8x128xf32>
    %27 = arith.andi %26, %20 : vector<8x128xi1>
    %28 = arith.sitofp %18 : vector<8x128xi32> to vector<8x128xf32>
    %cst_14 = arith.constant 4.000000e+00 : f32
    %29 = vector.broadcast %cst_14 : f32 to vector<8x128xf32>
    %30 = arith.select %27, %28, %29 : vector<8x128xi1>, vector<8x128xf32>
    %cst_15 = arith.constant dense<0x7F800000> : vector<8xf32>
    %31 = vector.multi_reduction <minimumf>, %30, %cst_15 [1] : vector<8x128xf32> to vector<8xf32>
    %32 = vector.shape_cast %31 : vector<8xf32> to vector<8x1xf32>
    %33 = arith.fptosi %32 : vector<8x1xf32> to vector<8x1xi32>
    %c0_16 = arith.constant 0 : index
    %c0_17 = arith.constant 0 : index
    %34 = vector.load %arg5[%c0_16, %c0_17] : memref<8x1xi32, #tpu.memory_space<vmem>>, vector<8x1xi32>
    tpu.vector_store %arg5[%c0_16, %c0_17], %33 {strides = array<i32>} : memref<8x1xi32, #tpu.memory_space<vmem>>, vector<8x1xi32>,
    return
  }
  func.func @transform_0(%arg0: i32) -> (i32, i32) {
    %c0_i32 = arith.constant 0 : i32
    %c0_i32_0 = arith.constant 0 : i32
    return %arg0, %c0_i32 : i32, i32
  }
  func.func @transform_1(%arg0: i32) -> (i32, i32) {
    %c0_i32 = arith.constant 0 : i32
    %c0_i32_0 = arith.constant 0 : i32
    %c0_i32_1 = arith.constant 0 : i32
    return %c0_i32, %c0_i32_0 : i32, i32
  }
  func.func @transform_2(%arg0: i32) -> (i32, i32) {
    %c0_i32 = arith.constant 0 : i32
    %c0_i32_0 = arith.constant 0 : i32
    %c0_i32_1 = arith.constant 0 : i32
    return %c0_i32, %c0_i32_0 : i32, i32
  }
  func.func @transform_3(%arg0: i32) -> (i32, i32) {
    %c0_i32 = arith.constant 0 : i32
    %c0_i32_0 = arith.constant 0 : i32
    return %arg0, %c0_i32 : i32, i32
  }
  func.func @transform_4(%arg0: i32) -> (i32, i32) {
    %c0_i32 = arith.constant 0 : i32
    %c0_i32_0 = arith.constant 0 : i32
    return %arg0, %c0_i32 : i32, i32
  }
}

</mosaic_0001>

<llo_original>
// kernel: tpu_custom_call.1
$region0: #{tpu_custom_call.1}
  #allocation0 [shape = 'u32[]', space=smem, size = 0x4, offset = 0x4, fixed_abs, tag = 'smem constant byte address 0x4 - core index']
  #allocation1 [shape = 'u32[72,128]{1,0:T(1,128)}', space=vmem, size = 0x9000, scoped, tag = 'internal scratch']
  %s0 = inlined_call_operand.hbm [shape: f32[12,32], index: 0, kind: input, shape index: {}]
  %s1 = inlined_call_operand.hbm [shape: bf16[32,128], index: 1, kind: input, shape index: {}]
  %s2 = inlined_call_operand.vmem [shape: f32[1,128], index: 2, kind: input, shape index: {}]
  %s3 = inlined_call_operand.hbm [shape: f32[12,128], index: 3, kind: output, shape index: {0}]
  %s4 = inlined_call_operand.vmem [shape: s32[12,1], index: 4, kind: output, shape index: {1}]
  %5 = xla_tuple %s3, %s4
  %s6 = sld [smem:[#allocation0]]
  $region61: #{tpu_custom_call.1} parent=0
    _
  %s8 = ssub.s32 1, %s6
  %s9 = scalar_select 0, %s8, %s6
  $region1: #{tpu_custom_call.1} parent=0
    #allocation2 [shape = 'u8[8192]{0}', space=vmem, size = 0x2000, scoped, tag = 'input window, operand 0']
    #allocation3 [shape = 's32[2]{0}', space=sflag, size = 0x8, scoped, tag = 'scoped memory for tpu_custom_call.1']
    #allocation4 [shape = 's32[2]{0}', space=sflag, size = 0x8, scoped, tag = 'scoped memory for tpu_custom_call.1']
    #allocation5 [shape = 'u8[8192]{0}', space=vmem, size = 0x2000, scoped, tag = 'input window, operand 1, single buffered']
    #allocation6 [shape = 's32[1]{0}', space=sflag, size = 0x4, scoped, tag = 'scoped memory for tpu_custom_call.1']
    #allocation7 [shape = 'u8[8192]{0}', space=vmem, size = 0x2000, scoped, tag = 'output window, operand 0']
    %10 = vsyncpa [#allocation3], 0
    %s11 = scalar_lea.sflag [#allocation3], 1
    %12 = vsyncpa %s11, 0
    %13 = vsyncpa [#allocation6], 0
    %14 = vsyncpa [#allocation4], 0
    %s15 = scalar_lea.sflag [#allocation4], 1
    %16 = vsyncpa %s15, 0
    loop: start=0, step=1, limit=4
    $region2: #{tpu_custom_call.1} parent=1 // loop_pre_header
      _
    $region3: #{tpu_custom_call.1} parent=1 // loop_header
      %s18 = sphi 0, %s22
      %p19 = scmp.ge.s32.totalorder %s18, 4
      %s28 = sphi 0, %s30
      %s31 = sphi 0, %s28
      %s32 = sphi 0, %s31
      %s48 = sphi 0, %s32
      %s52 = sphi 0, %s52
      %s54 = sphi 0, %s52
      %s55 = sphi 0, %s54
      %s69 = sphi 0, %s55
      %s73 = sphi 0, %s73
      %s75 = sphi 0, %s73
      %s76 = sphi 0, %s75
      %s90 = sphi 0, %s76
      %s96 = sphi 0, %s98
      %s99 = sphi 0, %s96
      %s100 = sphi 0, %s99
      %s116 = sphi 0, %s100
      %s122 = sphi 0, %s124
      %s125 = sphi 0, %s122
      %s126 = sphi 0, %s125
      %s142 = sphi 0, %s126
    $region4: #{tpu_custom_call.1} parent=1 // loop_header_branch
      %21 = sbr.rel (%p19) target = $region8
    $region5: #{tpu_custom_call.1} parent=1 // loop_body
      %s23 = ssub.s32 %s18, 1
      %s24 = ssub.s32 %s18, 2
      %s25 = sadd.s32 %s18, 1
      %s26 = ssub.s32 %s18, %s25
      %p27 = scmp.eq.s32.totalorder %s26, 0
      %s29 = sadd.s32 %s28, 1
      %s30 = scalar_select %p27, %s28, %s29
      %p33 = pneg %p27
      %p34 = scmp.eq.s32.totalorder %s18, 1
      %p35 = por %p33, %p34
      %p36 = scmp.ne.s32.totalorder %s28, %s31
      %p37 = scmp.eq.s32.totalorder %s18, 0
      %p38 = por %p36, %p37
      %p39 = scmp.ne.s32.totalorder %s28, %s31
      %p40 = scmp.eq.s32.totalorder %s23, 1
      %p41 = por %p39, %p40
      %p42 = scmp.ne.s32.totalorder %s31, %s32
      %p43 = scmp.eq.s32.totalorder %s23, 0
      %p44 = por %p42, %p43
      %p45 = scmp.ne.s32.totalorder %s31, %s32
      %p46 = scmp.eq.s32.totalorder %s24, 1
      %p47 = por %p45, %p46
      %p49 = scmp.ne.s32.totalorder %s32, %s48
      %p50 = scmp.eq.s32.totalorder %s24, 0
      %p51 = por %p49, %p50
      %s53 = sadd.s32 %s52, 1
      %p56 = scmp.eq.s32.totalorder %s18, 1
      %p57 = scmp.ne.s32.totalorder %s52, %s54
      %p58 = scmp.eq.s32.totalorder %s18, 0
      %p59 = por %p57, %p58
      %p60 = scmp.ne.s32.totalorder %s52, %s54
      %p61 = scmp.eq.s32.totalorder %s23, 1
      %p62 = por %p60, %p61
      %p63 = scmp.ne.s32.totalorder %s54, %s55
      %p64 = scmp.eq.s32.totalorder %s23, 0
      %p65 = por %p63, %p64
      %p66 = scmp.ne.s32.totalorder %s54, %s55
      %p67 = scmp.eq.s32.totalorder %s24, 1
      %p68 = por %p66, %p67
      %p70 = scmp.ne.s32.totalorder %s55, %s69
      %p71 = scmp.eq.s32.totalorder %s24, 0
      %p72 = por %p70, %p71
      %s74 = sadd.s32 %s73, 1
      %p77 = scmp.eq.s32.totalorder %s18, 1
      %p78 = scmp.ne.s32.totalorder %s73, %s75
      %p79 = scmp.eq.s32.totalorder %s18, 0
      %p80 = por %p78, %p79
      %p81 = scmp.ne.s32.totalorder %s73, %s75
      %p82 = scmp.eq.s32.totalorder %s23, 1
      %p83 = por %p81, %p82
      %p84 = scmp.ne.s32.totalorder %s75, %s76
      %p85 = scmp.eq.s32.totalorder %s23, 0
      %p86 = por %p84, %p85
      %p87 = scmp.ne.s32.totalorder %s75, %s76
      %p88 = scmp.eq.s32.totalorder %s24, 1
      %p89 = por %p87, %p88
      %p91 = scmp.ne.s32.totalorder %s76, %s90
      %p92 = scmp.eq.s32.totalorder %s24, 0
      %p93 = por %p91, %p92
      %s94 = ssub.s32 %s18, %s25
      %p95 = scmp.eq.s32.totalorder %s94, 0
      %s97 = sadd.s32 %s96, 1
      %s98 = scalar_select %p95, %s96, %s97
      %p101 = pneg %p95
      %p102 = scmp.eq.s32.totalorder %s18, 1
      %p103 = por %p101, %p102
      %p104 = scmp.ne.s32.totalorder %s96, %s99
      %p105 = scmp.eq.s32.totalorder %s18, 0
      %p106 = por %p104, %p105
      %p107 = scmp.ne.s32.totalorder %s96, %s99
      %p108 = scmp.eq.s32.totalorder %s23, 1
      %p109 = por %p107, %p108
      %p110 = scmp.ne.s32.totalorder %s99, %s100
      %p111 = scmp.eq.s32.totalorder %s23, 0
      %p112 = por %p110, %p111
      %p113 = scmp.ne.s32.totalorder %s99, %s100
      %p114 = scmp.eq.s32.totalorder %s24, 1
      %p115 = por %p113, %p114
      %p117 = scmp.ne.s32.totalorder %s100, %s116
      %p118 = scmp.eq.s32.totalorder %s24, 0
      %p119 = por %p117, %p118
      %s120 = ssub.s32 %s18, %s25
      %p121 = scmp.eq.s32.totalorder %s120, 0
      %s123 = sadd.s32 %s122, 1
      %s124 = scalar_select %p121, %s122, %s123
      %p127 = pneg %p121
      %p128 = scmp.eq.s32.totalorder %s18, 1
      %p129 = por %p127, %p128
      %p130 = scmp.ne.s32.totalorder %s122, %s125
      %p131 = scmp.eq.s32.totalorder %s18, 0
      %p132 = por %p130, %p131
      %p133 = scmp.ne.s32.totalorder %s122, %s125
      %p134 = scmp.eq.s32.totalorder %s23, 1
      %p135 = por %p133, %p134
      %p136 = scmp.ne.s32.totalorder %s125, %s126
      %p137 = scmp.eq.s32.totalorder %s23, 0
      %p138 = por %p136, %p137
      %p139 = scmp.ne.s32.totalorder %s125, %s126
      %p140 = scmp.eq.s32.totalorder %s24, 1
      %p141 = por %p139, %p140
      %p143 = scmp.ne.s32.totalorder %s126, %s142
      %p144 = scmp.eq.s32.totalorder %s24, 0
      %p145 = por %p143, %p144
      %p146 = scmp.le.s32.totalorder 1, %s18
      %p147 = scmp.lt.s32.totalorder %s18, 3
      %p148 = pnand %p146, %p147
      %p149 = pneg %p148
      // Predicated region
      $region9: #{tpu_custom_call.1} parent=5 // pred_check
        _
      $region10: #{tpu_custom_call.1} parent=5 // pred_check_branch
        %151 = sbr.rel (%p148) target = $region12
      $region11: #{tpu_custom_call.1} parent=5 // pred_region
        %s152 = ssub.s32 %s18, 1
        // Predicated region
        $region13: #{tpu_custom_call.1} parent=11 // pred_check
          %p153 = pneg %p65
        $region14: #{tpu_custom_call.1} parent=11 // pred_check_branch
          %155 = sbr.rel (%p153) target = $region16
        $region15: #{tpu_custom_call.1} parent=11 // pred_region
          %157 = vsyncadd [#allocation6], 0
          %s158 = sshll.u32 %s1, 4
          %s159 = int_to_ptr.hbm [resolvable:$true] %s158
          %s160 = sshll.u32 [#allocation5], 4
          %s161 = int_to_ptr.vmem [resolvable:$true] %s160
          %166 = dma.hbm_to_vmem [thread:$0]  %s159, 256, %s161, [#allocation6], 64, 64, 4
        $region16: #{tpu_custom_call.1} parent=11 // pred_fallthru
          _
        // Predicated region
        $region17: #{tpu_custom_call.1} parent=11 // pred_check
          %p167 = pneg %p86
        $region18: #{tpu_custom_call.1} parent=11 // pred_check_branch
          %169 = sbr.rel (%p167) target = $region20
        $region19: #{tpu_custom_call.1} parent=11 // pred_region
          _
        $region20: #{tpu_custom_call.1} parent=11 // pred_fallthru
          _
      $region12: #{tpu_custom_call.1} parent=5 // pred_fallthru
        _
      %p170 = scmp.lt.s32.totalorder %s18, 2
      // Predicated region
      $region21: #{tpu_custom_call.1} parent=5 // pred_check
        %p171 = pneg %p170
      $region22: #{tpu_custom_call.1} parent=5 // pred_check_branch
        %173 = sbr.rel (%p171) target = $region24
      $region23: #{tpu_custom_call.1} parent=5 // pred_region
        // Predicated region
        $region25: #{tpu_custom_call.1} parent=23 // pred_check
          %p174 = pneg %p38
        $region26: #{tpu_custom_call.1} parent=23 // pred_check_branch
          %176 = sbr.rel (%p174) target = $region28
        $region27: #{tpu_custom_call.1} parent=23 // pred_region
          %s177 = sand.u32 %s28, 1
          %s178 = scalar_lea.sflag [#allocation3], %s177
          %s179 = sand.u32 %s28, 1
          %s180 = smul.addr %s179, 8
          %s181 = scalar_lea.vmem [#allocation2], %s180
          %183 = vsyncadd %s178, 0
          %s184 = smul.addr %s18, 8
          %s185 = scalar_lea.hbm %s0, %s184
          %s187 = sshll.u32 %s185, 4
          %s188 = int_to_ptr.hbm [resolvable:$true] %s187
          %s189 = sshll.u32 %s181, 4
          %s190 = int_to_ptr.vmem [resolvable:$true] %s189
          %192 = dma.hbm_to_vmem [thread:$0]  %s188, 128, %s190, %s178
        $region28: #{tpu_custom_call.1} parent=23 // pred_fallthru
          _
      $region24: #{tpu_custom_call.1} parent=5 // pred_fallthru
        _
      %p193 = scmp.le.s32.totalorder 1, %s18
      %p194 = scmp.lt.s32.totalorder %s18, 3
      %p195 = pnand %p193, %p194
      %p196 = pneg %p195
      // Predicated region
      $region29: #{tpu_custom_call.1} parent=5 // pred_check
        _
      $region30: #{tpu_custom_call.1} parent=5 // pred_check_branch
        %198 = sbr.rel (%p195) target = $region32
      $region31: #{tpu_custom_call.1} parent=5 // pred_region
        %s199 = ssub.s32 %s18, 1
        %s200 = sand.u32 %s31, 1
        %s201 = scalar_lea.sflag [#allocation3], %s200
        %s202 = sand.u32 %s31, 1
        %s203 = smul.addr %s202, 8
        %s204 = scalar_lea.vmem [#allocation2], %s203
        // Predicated region
        $region33: #{tpu_custom_call.1} parent=31 // pred_check
          %p205 = pneg %p44
        $region34: #{tpu_custom_call.1} parent=31 // pred_check_branch
          %207 = sbr.rel (%p205) target = $region36
        $region35: #{tpu_custom_call.1} parent=31 // pred_region
          %209 = dma.done %s201, 128
        $region36: #{tpu_custom_call.1} parent=31 // pred_fallthru
          _
        // Predicated region
        $region37: #{tpu_custom_call.1} parent=31 // pred_check
          %p210 = pneg %p65
        $region38: #{tpu_custom_call.1} parent=31 // pred_check_branch
          %212 = sbr.rel (%p210) target = $region40
        $region39: #{tpu_custom_call.1} parent=31 // pred_region
          %214 = dma.done [#allocation6], 256
        $region40: #{tpu_custom_call.1} parent=31 // pred_fallthru
          _
        %s215 = sand.u32 %s31, 1
        %s216 = scalar_lea.sflag [#allocation3], %s215
        %s217 = sand.u32 %s31, 1
        %s218 = smul.addr %s217, 8
        %s219 = scalar_lea.vmem [#allocation2], %s218
        %p220 = pneg %p44
        %p221 = pneg %p41
        %p222 = pneg %p65
        %p223 = pneg %p62
        %p224 = pneg %p86
        %p225 = pneg %p83
        %p226 = pneg %p112
        %p227 = pneg %p109
        %s228 = sand.u32 %s99, 1
        %s229 = scalar_lea.sflag [#allocation4], %s228
        %s230 = sand.u32 %s99, 1
        %s231 = smul.addr %s230, 8
        %s232 = scalar_lea.vmem [#allocation7], %s231
        %p233 = pneg %p138
        %p234 = pneg %p135
        %p235 = scmp.lt.s32.totalorder %s23, 1
        %s236 = scalar_select %p235, %s23, 1
        %s237 = smul.addr %s236, 8
        %s238 = scalar_lea.vmem %s4, %s237
        %p239 = scmp.lt.s32.totalorder %s23, 1
        %s240 = scalar_select %p239, %s23, 1
        %s241 = smul.addr %s240, 8
        %s242 = scalar_lea.vmem %s4, %s241
        %v244 = vld [vmem:[%s204] sm:$0xff]
        %v245 = vmul.f32 %v244, %v244
        %vm246 = vcmask 261120
        %v247 = vsel %vm246, %v245, 0.0
        %248 = vadd.xlane.f32.xlu0 %v247
        %v249 = vpop.xlane.xlu0 %248
        %v250 = vpack.c.bf16 %v244, %v244
        %v251 = vld [vmem:[#allocation5] sm:$0xf]
        %v252 = vld [vmem:[#allocation5 + $0x4] sm:$0xf]
        %v253 = vld [vmem:[#allocation5 + $0x8] sm:$0xf]
        %v254 = vld [vmem:[#allocation5 + $0xc] sm:$0xf]
        %v259 = vunpack.c.l.b16 %v251
        %v260 = vunpack.c.l.b16 %v252
        %v261 = vunpack.c.l.b16 %v253
        %v262 = vunpack.c.l.b16 %v254
        %v263 = vpack.c.b16 %v260, %v259
        %v264 = vpack.c.b16 %v262, %v261
        %v268 = vsel %vm246, %v250, 0
        %270 = vmatpush.bf16.msra.mxu0 0
        %271 = vmatpush.bf16.msra.mxu0 0
        %272 = vmatpush.bf16.msra.mxu0 0
        %273 = vmatpush.bf16.msra.mxu0 0
        %274 = vmatpush.bf16.msra.mxu0 0
        %275 = vmatpush.bf16.msra.mxu0 0
        %276 = vmatpush.bf16.msra.mxu0 %v264
        %277 = vmatpush.bf16.msra.mxu0 %v263
        %278 = vmatmul.bf16.gmra.mxu0 %v268
        %v279 = vpop.f32.mrf.mxu0
        %v280 = vadd.f32 0.0, %v279
        %v281 = vpop.f32.mrf.mxu0
        %282 = vdwg.mxu0
        %v283 = vmul.f32 %v280, 2.0
        %v284 = vsub.f32 %v283, %v249
        %v285 = vld [vmem:[%s2] sm:$0x1]
        %v287 = vperm.slane %v285, 0
        %v289 = vsub.f32 %v284, %v287
        %v290 = vmul.f32 %v289, 0.015625
        %291 = vst [vmem:[%s232] sm:$0xff] %v290
        %v292 = vlaneseq
        %v293 = vand.u32 %v292, 127
        %vm294 = vcmp.lt.s32.totalorder %v293, 4
        %v295 = vsel %vm294, %v290, -inf
        %296 = vmax.xlane.f32.xlu0 %v295
        %v297 = vpop.xlane.xlu0 %296
        %vm298 = vcmp.eq.f32.partialorder %v295, %v297
        %vm299 = vmand %vm298, %vm294
        %v300 = vcvt.s32.f32 %v293
        %v301 = vsel %vm299, %v300, 4.0
        %302 = vmin.xlane.f32.xlu0 %v301
        %v303 = vpop.xlane.xlu0 %302
        %v304 = vcvt.f32.s32.to.zero.pseudo %v303
        %vm305 = vcmask 7168
        %306 = vst.msk [vmem:[%s242] sm:$0xff] %vm305, %v304
        %s307 = sand.u32 %s99, 1
        %s308 = scalar_lea.sflag [#allocation4], %s307
        %s309 = sand.u32 %s99, 1
        %s310 = smul.addr %s309, 8
        %s311 = scalar_lea.vmem [#allocation7], %s310
        %p312 = scmp.lt.s32.totalorder %s23, 1
        %s313 = scalar_select %p312, %s23, 1
        %s314 = smul.addr %s313, 8
        %s315 = scalar_lea.vmem %s4, %s314
        // Predicated region
        $region41: #{tpu_custom_call.1} parent=31 // pred_check
          %p316 = pneg %p109
        $region42: #{tpu_custom_call.1} parent=31 // pred_check_branch
          %318 = sbr.rel (%p316) target = $region44
        $region43: #{tpu_custom_call.1} parent=31 // pred_region
          %320 = vsyncadd %s308, 0
          %s321 = smul.addr %s23, 8
          %s322 = scalar_lea.hbm %s3, %s321
          %s324 = sshll.u32 %s311, 4
          %s325 = int_to_ptr.vmem [resolvable:$true] %s324
          %s326 = sshll.u32 %s322, 4
          %s327 = int_to_ptr.hbm [resolvable:$true] %s326
          %329 = dma.vmem_to_hbm [thread:$0]  %s325, 128, %s327, %s308
        $region44: #{tpu_custom_call.1} parent=31 // pred_fallthru
          _
        // Predicated region
        $region45: #{tpu_custom_call.1} parent=31 // pred_check
          %p330 = pneg %p135
        $region46: #{tpu_custom_call.1} parent=31 // pred_check_branch
          %332 = sbr.rel (%p330) target = $region48
        $region47: #{tpu_custom_call.1} parent=31 // pred_region
          _
        $region48: #{tpu_custom_call.1} parent=31 // pred_fallthru
          _
      $region32: #{tpu_custom_call.1} parent=5 // pred_fallthru
        _
      %p333 = scmp.le.s32.totalorder 2, %s18
      // Predicated region
      $region49: #{tpu_custom_call.1} parent=5 // pred_check
        %p334 = pneg %p333
      $region50: #{tpu_custom_call.1} parent=5 // pred_check_branch
        %336 = sbr.rel (%p334) target = $region52
      $region51: #{tpu_custom_call.1} parent=5 // pred_region
        %s337 = ssub.s32 %s18, 2
        // Predicated region
        $region53: #{tpu_custom_call.1} parent=51 // pred_check
          %p338 = pneg %p115
        $region54: #{tpu_custom_call.1} parent=51 // pred_check_branch
          %340 = sbr.rel (%p338) target = $region56
        $region55: #{tpu_custom_call.1} parent=51 // pred_region
          %s341 = sand.u32 %s100, 1
          %s342 = scalar_lea.sflag [#allocation4], %s341
          %s343 = sand.u32 %s100, 1
          %s344 = smul.addr %s343, 8
          %s345 = scalar_lea.vmem [#allocation7], %s344
          %347 = dma.done %s342, 128
        $region56: #{tpu_custom_call.1} parent=51 // pred_fallthru
          _
        // Predicated region
        $region57: #{tpu_custom_call.1} parent=51 // pred_check
          %p348 = pneg %p141
        $region58: #{tpu_custom_call.1} parent=51 // pred_check_branch
          %350 = sbr.rel (%p348) target = $region60
        $region59: #{tpu_custom_call.1} parent=51 // pred_region
          %p351 = scmp.lt.s32.totalorder %s24, 1
          %s352 = scalar_select %p351, %s24, 1
          %s353 = smul.addr %s352, 8
          %s354 = scalar_lea.vmem %s4, %s353
        $region60: #{tpu_custom_call.1} parent=51 // pred_fallthru
          _
      $region52: #{tpu_custom_call.1} parent=5 // pred_fallthru
        _
    $region6: #{tpu_custom_call.1} parent=1 // loop_footer
      %s22 = sadd.s32 1, %s18
    $region7: #{tpu_custom_call.1} parent=1 // loop_footer_branch
      %17 = sbr.rel target = $region3
    $region8: #{tpu_custom_call.1} parent=1 // loop_exit
      _
    %355 = vsyncpa [#allocation3], 1
    %s356 = scalar_lea.sflag [#allocation3], 1
    %357 = vsyncpa %s356, 1
    %358 = vsyncpa [#allocation6], 1
    %359 = vsyncpa [#allocation4], 1
    %s360 = scalar_lea.sflag [#allocation4], 1
    %361 = vsyncpa %s360, 1

// kernel: tpu_custom_call.1
$region0: #{tpu_custom_call.1}
  #allocation0 [shape = 'u32[]', space=smem, size = 0x4, offset = 0x4, fixed_abs, tag = 'smem constant byte address 0x4 - core index']
  #allocation1 [shape = 'u32[72,128]{1,0:T(1,128)}', space=vmem, size = 0x9000, scoped, tag = 'internal scratch']
  %s0 = inlined_call_operand.hbm [shape: f32[12,32], index: 0, kind: input, shape index: {}]
  %s1 = inlined_call_operand.hbm [shape: bf16[32,128], index: 1, kind: input, shape index: {}]
  %s2 = inlined_call_operand.vmem [shape: f32[1,128], index: 2, kind: input, shape index: {}]
  %s3 = inlined_call_operand.hbm [shape: f32[12,128], index: 3, kind: output, shape index: {0}]
  %s4 = inlined_call_operand.vmem [shape: s32[12,1], index: 4, kind: output, shape index: {1}]
  %5 = xla_tuple %s3, %s4
  %s6 = sld [smem:[#allocation0]]
  $region61: #{tpu_custom_call.1} parent=0
    _
  %s8 = ssub.s32 1, %s6
  %s9 = scalar_select 0, %s8, %s6
  $region1: #{tpu_custom_call.1} parent=0
    #allocation2 [shape = 'u8[8192]{0}', space=vmem, size = 0x2000, scoped, tag = 'input window, operand 0']
    #allocation3 [shape = 's32[2]{0}', space=sflag, size = 0x8, scoped, tag = 'scoped memory for tpu_custom_call.1']
    #allocation4 [shape = 's32[2]{0}', space=sflag, size = 0x8, scoped, tag = 'scoped memory for tpu_custom_call.1']
    #allocation5 [shape = 'u8[8192]{0}', space=vmem, size = 0x2000, scoped, tag = 'input window, operand 1, single buffered']
    #allocation6 [shape = 's32[1]{0}', space=sflag, size = 0x4, scoped, tag = 'scoped memory for tpu_custom_call.1']
    #allocation7 [shape = 'u8[8192]{0}', space=vmem, size = 0x2000, scoped, tag = 'output window, operand 0']
    %10 = vsyncpa [#allocation3], 0
    %s11 = scalar_lea.sflag [#allocation3], 1
    %12 = vsyncpa %s11, 0
    %13 = vsyncpa [#allocation6], 0
    %14 = vsyncpa [#allocation4], 0
    %s15 = scalar_lea.sflag [#allocation4], 1
    %16 = vsyncpa %s15, 0
    loop: start=0, step=1, limit=4
    $region2: #{tpu_custom_call.1} parent=1 // loop_pre_header
      _
    $region3: #{tpu_custom_call.1} parent=1 // loop_header
      %s18 = sphi 0, %s22
      %p19 = scmp.ge.s32.totalorder %s18, 4
      %s28 = sphi 0, %s30
      %s31 = sphi 0, %s28
      %s32 = sphi 0, %s31
      %s48 = sphi 0, %s32
      %s52 = sphi 0, %s52
      %s54 = sphi 0, %s52
      %s55 = sphi 0, %s54
      %s69 = sphi 0, %s55
      %s73 = sphi 0, %s73
      %s75 = sphi 0, %s73
      %s76 = sphi 0, %s75
      %s90 = sphi 0, %s76
      %s96 = sphi 0, %s98
      %s99 = sphi 0, %s96
      %s100 = sphi 0, %s99
      %s116 = sphi 0, %s100
      %s122 = sphi 0, %s124
      %s125 = sphi 0, %s122
      %s126 = sphi 0, %s125
      %s142 = sphi 0, %s126
    $region4: #{tpu_custom_call.1} parent=1 // loop_header_branch
      %21 = sbr.rel (%p19) target = $region8
    $region5: #{tpu_custom_call.1} parent=1 // loop_body
      %s23 = ssub.s32 %s18, 1
      %s24 = ssub.s32 %s18, 2
      %s25 = sadd.s32 %s18, 1
      %s26 = ssub.s32 %s18, %s25
      %p27 = scmp.eq.s32.totalorder %s26, 0
      %s29 = sadd.s32 %s28, 1
      %s30 = scalar_select %p27, %s28, %s29
      %p33 = pneg %p27
      %p34 = scmp.eq.s32.totalorder %s18, 1
      %p35 = por %p33, %p34
      %p36 = scmp.ne.s32.totalorder %s28, %s31
      %p37 = scmp.eq.s32.totalorder %s18, 0
      %p38 = por %p36, %p37
      %p39 = scmp.ne.s32.totalorder %s28, %s31
      %p40 = scmp.eq.s32.totalorder %s23, 1
      %p41 = por %p39, %p40
      %p42 = scmp.ne.s32.totalorder %s31, %s32
      %p43 = scmp.eq.s32.totalorder %s23, 0
      %p44 = por %p42, %p43
      %p45 = scmp.ne.s32.totalorder %s31, %s32
      %p46 = scmp.eq.s32.totalorder %s24, 1
      %p47 = por %p45, %p46
      %p49 = scmp.ne.s32.totalorder %s32, %s48
      %p50 = scmp.eq.s32.totalorder %s24, 0
      %p51 = por %p49, %p50
      %s53 = sadd.s32 %s52, 1
      %p56 = scmp.eq.s32.totalorder %s18, 1
      %p57 = scmp.ne.s32.totalorder %s52, %s54
      %p58 = scmp.eq.s32.totalorder %s18, 0
      %p59 = por %p57, %p58
      %p60 = scmp.ne.s32.totalorder %s52, %s54
      %p61 = scmp.eq.s32.totalorder %s23, 1
      %p62 = por %p60, %p61
      %p63 = scmp.ne.s32.totalorder %s54, %s55
      %p64 = scmp.eq.s32.totalorder %s23, 0
      %p65 = por %p63, %p64
      %p66 = scmp.ne.s32.totalorder %s54, %s55
      %p67 = scmp.eq.s32.totalorder %s24, 1
      %p68 = por %p66, %p67
      %p70 = scmp.ne.s32.totalorder %s55, %s69
      %p71 = scmp.eq.s32.totalorder %s24, 0
      %p72 = por %p70, %p71
      %s74 = sadd.s32 %s73, 1
      %p77 = scmp.eq.s32.totalorder %s18, 1
      %p78 = scmp.ne.s32.totalorder %s73, %s75
      %p79 = scmp.eq.s32.totalorder %s18, 0
      %p80 = por %p78, %p79
      %p81 = scmp.ne.s32.totalorder %s73, %s75
      %p82 = scmp.eq.s32.totalorder %s23, 1
      %p83 = por %p81, %p82
      %p84 = scmp.ne.s32.totalorder %s75, %s76
      %p85 = scmp.eq.s32.totalorder %s23, 0
      %p86 = por %p84, %p85
      %p87 = scmp.ne.s32.totalorder %s75, %s76
      %p88 = scmp.eq.s32.totalorder %s24, 1
      %p89 = por %p87, %p88
      %p91 = scmp.ne.s32.totalorder %s76, %s90
      %p92 = scmp.eq.s32.totalorder %s24, 0
      %p93 = por %p91, %p92
      %s94 = ssub.s32 %s18, %s25
      %p95 = scmp.eq.s32.totalorder %s94, 0
      %s97 = sadd.s32 %s96, 1
      %s98 = scalar_select %p95, %s96, %s97
      %p101 = pneg %p95
      %p102 = scmp.eq.s32.totalorder %s18, 1
      %p103 = por %p101, %p102
      %p104 = scmp.ne.s32.totalorder %s96, %s99
      %p105 = scmp.eq.s32.totalorder %s18, 0
      %p106 = por %p104, %p105
      %p107 = scmp.ne.s32.totalorder %s96, %s99
      %p108 = scmp.eq.s32.totalorder %s23, 1
      %p109 = por %p107, %p108
      %p110 = scmp.ne.s32.totalorder %s99, %s100
      %p111 = scmp.eq.s32.totalorder %s23, 0
      %p112 = por %p110, %p111
      %p113 = scmp.ne.s32.totalorder %s99, %s100
      %p114 = scmp.eq.s32.totalorder %s24, 1
      %p115 = por %p113, %p114
      %p117 = scmp.ne.s32.totalorder %s100, %s116
      %p118 = scmp.eq.s32.totalorder %s24, 0
      %p119 = por %p117, %p118
      %s120 = ssub.s32 %s18, %s25
      %p121 = scmp.eq.s32.totalorder %s120, 0
      %s123 = sadd.s32 %s122, 1
      %s124 = scalar_select %p121, %s122, %s123
      %p127 = pneg %p121
      %p128 = scmp.eq.s32.totalorder %s18, 1
      %p129 = por %p127, %p128
      %p130 = scmp.ne.s32.totalorder %s122, %s125
      %p131 = scmp.eq.s32.totalorder %s18, 0
      %p132 = por %p130, %p131
      %p133 = scmp.ne.s32.totalorder %s122, %s125
      %p134 = scmp.eq.s32.totalorder %s23, 1
      %p135 = por %p133, %p134
      %p136 = scmp.ne.s32.totalorder %s125, %s126
      %p137 = scmp.eq.s32.totalorder %s23, 0
      %p138 = por %p136, %p137
      %p139 = scmp.ne.s32.totalorder %s125, %s126
      %p140 = scmp.eq.s32.totalorder %s24, 1
      %p141 = por %p139, %p140
      %p143 = scmp.ne.s32.totalorder %s126, %s142
      %p144 = scmp.eq.s32.totalorder %s24, 0
      %p145 = por %p143, %p144
      %p146 = scmp.le.s32.totalorder 1, %s18
      %p147 = scmp.lt.s32.totalorder %s18, 3
      %p148 = pnand %p146, %p147
      %p149 = pneg %p148
      // Predicated region
      $region9: #{tpu_custom_call.1} parent=5 // pred_check
        _
      $region10: #{tpu_custom_call.1} parent=5 // pred_check_branch
        %151 = sbr.rel (%p148) target = $region12
      $region11: #{tpu_custom_call.1} parent=5 // pred_region
        %s152 = ssub.s32 %s18, 1
        // Predicated region
        $region13: #{tpu_custom_call.1} parent=11 // pred_check
          %p153 = pneg %p65
        $region14: #{tpu_custom_call.1} parent=11 // pred_check_branch
          %155 = sbr.rel (%p153) target = $region16
        $region15: #{tpu_custom_call.1} parent=11 // pred_region
          %157 = vsyncadd [#allocation6], 0
          %s158 = sshll.u32 %s1, 4
          %s159 = int_to_ptr.hbm [resolvable:$true] %s158
          %s160 = sshll.u32 [#allocation5], 4
          %s161 = int_to_ptr.vmem [resolvable:$true] %s160
          %166 = dma.hbm_to_vmem [thread:$0]  %s159, 256, %s161, [#allocation6], 64, 64, 4
        $region16: #{tpu_custom_call.1} parent=11 // pred_fallthru
          _
        // Predicated region
        $region17: #{tpu_custom_call.1} parent=11 // pred_check
          %p167 = pneg %p86
        $region18: #{tpu_custom_call.1} parent=11 // pred_check_branch
          %169 = sbr.rel (%p167) target = $region20
        $region19: #{tpu_custom_call.1} parent=11 // pred_region
          _
        $region20: #{tpu_custom_call.1} parent=11 // pred_fallthru
          _
      $region12: #{tpu_custom_call.1} parent=5 // pred_fallthru
        _
      %p170 = scmp.lt.s32.totalorder %s18, 2
      // Predicated region
      $region21: #{tpu_custom_call.1} parent=5 // pred_check
        %p171 = pneg %p170
      $region22: #{tpu_custom_call.1} parent=5 // pred_check_branch
        %173 = sbr.rel (%p171) target = $region24
      $region23: #{tpu_custom_call.1} parent=5 // pred_region
        // Predicated region
        $region25: #{tpu_custom_call.1} parent=23 // pred_check
          %p174 = pneg %p38
        $region26: #{tpu_custom_call.1} parent=23 // pred_check_branch
          %176 = sbr.rel (%p174) target = $region28
        $region27: #{tpu_custom_call.1} parent=23 // pred_region
          %s177 = sand.u32 %s28, 1
          %s178 = scalar_lea.sflag [#allocation3], %s177
          %s179 = sand.u32 %s28, 1
          %s180 = smul.addr %s179, 8
          %s181 = scalar_lea.vmem [#allocation2], %s180
          %183 = vsyncadd %s178, 0
          %s184 = smul.addr %s18, 8
          %s185 = scalar_lea.hbm %s0, %s184
          %s187 = sshll.u32 %s185, 4
          %s188 = int_to_ptr.hbm [resolvable:$true] %s187
          %s189 = sshll.u32 %s181, 4
          %s190 = int_to_ptr.vmem [resolvable:$true] %s189
          %192 = dma.hbm_to_vmem [thread:$0]  %s188, 128, %s190, %s178
        $region28: #{tpu_custom_call.1} parent=23 // pred_fallthru
          _
      $region24: #{tpu_custom_call.1} parent=5 // pred_fallthru
        _
      %p193 = scmp.le.s32.totalorder 1, %s18
      %p194 = scmp.lt.s32.totalorder %s18, 3
      %p195 = pnand %p193, %p194
      %p196 = pneg %p195
      // Predicated region
      $region29: #{tpu_custom_call.1} parent=5 // pred_check
        _
      $region30: #{tpu_custom_call.1} parent=5 // pred_check_branch
        %198 = sbr.rel (%p195) target = $region32
      $region31: #{tpu_custom_call.1} parent=5 // pred_region
        %s199 = ssub.s32 %s18, 1
        %s200 = sand.u32 %s31, 1
        %s201 = scalar_lea.sflag [#allocation3], %s200
        %s202 = sand.u32 %s31, 1
        %s203 = smul.addr %s202, 8
        %s204 = scalar_lea.vmem [#allocation2], %s203
        // Predicated region
        $region33: #{tpu_custom_call.1} parent=31 // pred_check
          %p205 = pneg %p44
        $region34: #{tpu_custom_call.1} parent=31 // pred_check_branch
          %207 = sbr.rel (%p205) target = $region36
        $region35: #{tpu_custom_call.1} parent=31 // pred_region
          %209 = dma.done %s201, 128
        $region36: #{tpu_custom_call.1} parent=31 // pred_fallthru
          _
        // Predicated region
        $region37: #{tpu_custom_call.1} parent=31 // pred_check
          %p210 = pneg %p65
        $region38: #{tpu_custom_call.1} parent=31 // pred_check_branch
          %212 = sbr.rel (%p210) target = $region40
        $region39: #{tpu_custom_call.1} parent=31 // pred_region
          %214 = dma.done [#allocation6], 256
        $region40: #{tpu_custom_call.1} parent=31 // pred_fallthru
          _
        %s215 = sand.u32 %s31, 1
        %s216 = scalar_lea.sflag [#allocation3], %s215
        %s217 = sand.u32 %s31, 1
        %s218 = smul.addr %s217, 8
        %s219 = scalar_lea.vmem [#allocation2], %s218
        %p220 = pneg %p44
        %p221 = pneg %p41
        %p222 = pneg %p65
        %p223 = pneg %p62
        %p224 = pneg %p86
        %p225 = pneg %p83
        %p226 = pneg %p112
        %p227 = pneg %p109
        %s228 = sand.u32 %s99, 1
        %s229 = scalar_lea.sflag [#allocation4], %s228
        %s230 = sand.u32 %s99, 1
        %s231 = smul.addr %s230, 8
        %s232 = scalar_lea.vmem [#allocation7], %s231
        %p233 = pneg %p138
        %p234 = pneg %p135
        %p235 = scmp.lt.s32.totalorder %s23, 1
        %s236 = scalar_select %p235, %s23, 1
        %s237 = smul.addr %s236, 8
        %s238 = scalar_lea.vmem %s4, %s237
        %p239 = scmp.lt.s32.totalorder %s23, 1
        %s240 = scalar_select %p239, %s23, 1
        %s241 = smul.addr %s240, 8
        %s242 = scalar_lea.vmem %s4, %s241
        %v244 = vld [vmem:[%s204] sm:$0xff]
        %v245 = vmul.f32 %v244, %v244
        %vm246 = vcmask 261120
        %v247 = vsel %vm246, %v245, 0.0
        %248 = vadd.xlane.f32.xlu0 %v247
        %v249 = vpop.xlane.xlu0 %248
        %v250 = vpack.c.bf16 %v244, %v244
        %v251 = vld [vmem:[#allocation5] sm:$0xf]
        %v252 = vld [vmem:[#allocation5 + $0x4] sm:$0xf]
        %v253 = vld [vmem:[#allocation5 + $0x8] sm:$0xf]
        %v254 = vld [vmem:[#allocation5 + $0xc] sm:$0xf]
        %v259 = vunpack.c.l.b16 %v251
        %v260 = vunpack.c.l.b16 %v252
        %v261 = vunpack.c.l.b16 %v253
        %v262 = vunpack.c.l.b16 %v254
        %v263 = vpack.c.b16 %v260, %v259
        %v264 = vpack.c.b16 %v262, %v261
        %v268 = vsel %vm246, %v250, 0
        %270 = vmatpush.bf16.msra.mxu0 0
        %271 = vmatpush.bf16.msra.mxu0 0
        %272 = vmatpush.bf16.msra.mxu0 0
        %273 = vmatpush.bf16.msra.mxu0 0
        %274 = vmatpush.bf16.msra.mxu0 0
        %275 = vmatpush.bf16.msra.mxu0 0
        %276 = vmatpush.bf16.msra.mxu0 %v264
        %277 = vmatpush.bf16.msra.mxu0 %v263
        %278 = vmatmul.bf16.gmra.mxu0 %v268
        %v279 = vpop.f32.mrf.mxu0
        %v280 = vadd.f32 0.0, %v279
        %v281 = vpop.f32.mrf.mxu0
        %282 = vdwg.mxu0
        %v283 = vmul.f32 %v280, 2.0
        %v284 = vsub.f32 %v283, %v249
        %v285 = vld [vmem:[%s2] sm:$0x1]
        %v287 = vperm.slane %v285, 0
        %v289 = vsub.f32 %v284, %v287
        %v290 = vmul.f32 %v289, 0.015625
        %291 = vst [vmem:[%s232] sm:$0xff] %v290
        %v292 = vlaneseq
        %v293 = vand.u32 %v292, 127
        %vm294 = vcmp.lt.s32.totalorder %v293, 4
        %v295 = vsel %vm294, %v290, -inf
        %296 = vmax.xlane.f32.xlu0 %v295
        %v297 = vpop.xlane.xlu0 %296
        %vm298 = vcmp.eq.f32.partialorder %v295, %v297
        %vm299 = vmand %vm298, %vm294
        %v300 = vcvt.s32.f32 %v293
        %v301 = vsel %vm299, %v300, 4.0
        %302 = vmin.xlane.f32.xlu0 %v301
        %v303 = vpop.xlane.xlu0 %302
        %v304 = vcvt.f32.s32.to.zero.pseudo %v303
        %vm305 = vcmask 7168
        %306 = vst.msk [vmem:[%s242] sm:$0xff] %vm305, %v304
        %s307 = sand.u32 %s99, 1
        %s308 = scalar_lea.sflag [#allocation4], %s307
        %s309 = sand.u32 %s99, 1
        %s310 = smul.addr %s309, 8
        %s311 = scalar_lea.vmem [#allocation7], %s310
        %p312 = scmp.lt.s32.totalorder %s23, 1
        %s313 = scalar_select %p312, %s23, 1
        %s314 = smul.addr %s313, 8
        %s315 = scalar_lea.vmem %s4, %s314
        // Predicated region
        $region41: #{tpu_custom_call.1} parent=31 // pred_check
          %p316 = pneg %p109
        $region42: #{tpu_custom_call.1} parent=31 // pred_check_branch
          %318 = sbr.rel (%p316) target = $region44
        $region43: #{tpu_custom_call.1} parent=31 // pred_region
          %320 = vsyncadd %s308, 0
          %s321 = smul.addr %s23, 8
          %s322 = scalar_lea.hbm %s3, %s321
          %s324 = sshll.u32 %s311, 4
          %s325 = int_to_ptr.vmem [resolvable:$true] %s324
          %s326 = sshll.u32 %s322, 4
          %s327 = int_to_ptr.hbm [resolvable:$true] %s326
          %329 = dma.vmem_to_hbm [thread:$0]  %s325, 128, %s327, %s308
        $region44: #{tpu_custom_call.1} parent=31 // pred_fallthru
          _
        // Predicated region
        $region45: #{tpu_custom_call.1} parent=31 // pred_check
          %p330 = pneg %p135
        $region46: #{tpu_custom_call.1} parent=31 // pred_check_branch
          %332 = sbr.rel (%p330) target = $region48
        $region47: #{tpu_custom_call.1} parent=31 // pred_region
          _
        $region48: #{tpu_custom_call.1} parent=31 // pred_fallthru
          _
      $region32: #{tpu_custom_call.1} parent=5 // pred_fallthru
        _
      %p333 = scmp.le.s32.totalorder 2, %s18
      // Predicated region
      $region49: #{tpu_custom_call.1} parent=5 // pred_check
        %p334 = pneg %p333
      $region50: #{tpu_custom_call.1} parent=5 // pred_check_branch
        %336 = sbr.rel (%p334) target = $region52
      $region51: #{tpu_custom_call.1} parent=5 // pred_region
        %s337 = ssub.s32 %s18, 2
        // Predicated region
        $region53: #{tpu_custom_call.1} parent=51 // pred_check
          %p338 = pneg %p115
        $region54: #{tpu_custom_call.1} parent=51 // pred_check_branch
          %340 = sbr.rel (%p338) target = $region56
        $region55: #{tpu_custom_call.1} parent=51 // pred_region
          %s341 = sand.u32 %s100, 1
          %s342 = scalar_lea.sflag [#allocation4], %s341
          %s343 = sand.u32 %s100, 1
          %s344 = smul.addr %s343, 8
          %s345 = scalar_lea.vmem [#allocation7], %s344
          %347 = dma.done %s342, 128
        $region56: #{tpu_custom_call.1} parent=51 // pred_fallthru
          _
        // Predicated region
        $region57: #{tpu_custom_call.1} parent=51 // pred_check
          %p348 = pneg %p141
        $region58: #{tpu_custom_call.1} parent=51 // pred_check_branch
          %350 = sbr.rel (%p348) target = $region60
        $region59: #{tpu_custom_call.1} parent=51 // pred_region
          %p351 = scmp.lt.s32.totalorder %s24, 1
          %s352 = scalar_select %p351, %s24, 1
          %s353 = smul.addr %s352, 8
          %s354 = scalar_lea.vmem %s4, %s353
        $region60: #{tpu_custom_call.1} parent=51 // pred_fallthru
          _
      $region52: #{tpu_custom_call.1} parent=5 // pred_fallthru
        _
    $region6: #{tpu_custom_call.1} parent=1 // loop_footer
      %s22 = sadd.s32 1, %s18
    $region7: #{tpu_custom_call.1} parent=1 // loop_footer_branch
      %17 = sbr.rel target = $region3
    $region8: #{tpu_custom_call.1} parent=1 // loop_exit
      _
    %355 = vsyncpa [#allocation3], 1
    %s356 = scalar_lea.sflag [#allocation3], 1
    %357 = vsyncpa %s356, 1
    %358 = vsyncpa [#allocation6], 1
    %359 = vsyncpa [#allocation4], 1
    %s360 = scalar_lea.sflag [#allocation4], 1
    %361 = vsyncpa %s360, 1

</llo_original>
